<compile_context>
chip_gen: v5e
topology: v5e:2x2
jax: 0.10.0
libtpu: 0.0.40
codegen_flags: <defaults>
</compile_context>

<pallas_src>
import functools

import jax
import jax.numpy as jnp
from jax.experimental import pallas as pl
from jax.experimental.pallas import tpu as pltpu


def _custom_act_kernel(k_ref, x_ref, o_ref, *, compute_dtype):
    # k_ref lives in SMEM: k_ref[0] = k1, k_ref[1] = k2 (f32 scalars).
    k1 = k_ref[0].astype(compute_dtype)
    k2 = k_ref[1].astype(compute_dtype)
    x = x_ref[...].astype(compute_dtype)
    o_ref[...] = (x * k1 + k2).astype(o_ref.dtype)


def _vmem_limit_bytes():
    # v5e/v6e have 128 MiB physical VMEM -> allow ~64 MiB scoped.
    # v7x has 64 MiB physical -> keep the scoped limit at 32 MiB.
    try:
        vmem_cap = pltpu.get_tpu_info().vmem_capacity_bytes
    except Exception:
        vmem_cap = 64 << 20
    return int(min(64 << 20, max(32 << 20, vmem_cap // 2)))


def _compute_dtype_for(dtype):
    # bf16 VPU exists on v6e/v7x; v5e (and older) must compute in f32.
    if dtype != jnp.bfloat16:
        return jnp.float32
    try:
        kind = jax.devices()[0].device_kind.lower()
    except Exception:
        kind = ""
    if any(old in kind for old in ("v2", "v3", "v4", "v5")):
        return jnp.float32
    return jnp.bfloat16


def _run_tiled(k, x2d, out_dtype, compute_dtype, donate=False):
    rows, lane = x2d.shape
    itemsize = jnp.dtype(x2d.dtype).itemsize
    # Packed sublane count: 8 for f32, 16 for bf16, 32 for int8/fp8.
    sublane = max(8, 32 // itemsize)

    # ~4 MiB per tile buffer (block_rows is a multiple of the packed sublane
    # count so tiles stay layout-native for sub-32-bit dtypes).
    target_bytes = 4 << 20
    block_rows = (target_bytes // (lane * itemsize)) // sublane * sublane
    block_rows = max(sublane, min(rows, block_rows))

    # Guarantee at least 2 (balanced) grid steps when possible: shards work
    # across v7x's two TensorCores and lets double-buffering overlap.
    if rows >= 2 * sublane:
        half = (((rows + 1) // 2) + sublane - 1) // sublane * sublane
        block_rows = min(block_rows, half)

    grid = (pl.cdiv(rows, block_rows),)
    kernel = functools.partial(_custom_act_kernel, compute_dtype=compute_dtype)

    io_aliases = {1: 0} if (donate and out_dtype == x2d.dtype) else {}

    # NOTE: default 2-deep pipelining; a pipeline_mode=pl.Buffered(3) sweep
    # showed no need for a pure streaming kernel at 4 MiB tiles.
    return pl.pallas_call(
        kernel,
        out_shape=jax.ShapeDtypeStruct((rows, lane), out_dtype),
        grid=grid,
        in_specs=[
            pl.BlockSpec(memory_space=pltpu.SMEM),               # (k1, k2) scalars
            pl.BlockSpec((block_rows, lane), lambda i: (i, 0)),  # tiled input rows
        ],
        out_specs=pl.BlockSpec((block_rows, lane), lambda i: (i, 0)),
        input_output_aliases=io_aliases,
        compiler_params=pltpu.CompilerParams(
            dimension_semantics=("parallel",),
            vmem_limit_bytes=_vmem_limit_bytes(),
        ),
    )(k, x2d)


def _run_ragged(k, x2d, out_dtype, compute_dtype):
    # Ragged fallback: (1, total) view, 128-lane-multiple blocks, cdiv grid
    # masks the final partial block. No host-side pad or output slice copies.
    _, total = x2d.shape
    itemsize = jnp.dtype(x2d.dtype).itemsize

    target_bytes = 4 << 20
    block_lanes = (target_bytes // itemsize) // 128 * 128
    block_lanes = max(128, min(block_lanes, pl.cdiv(total, 128) * 128))

    grid = (pl.cdiv(total, block_lanes),)
    kernel = functools.partial(_custom_act_kernel, compute_dtype=compute_dtype)

    return pl.pallas_call(
        kernel,
        out_shape=jax.ShapeDtypeStruct((1, total), out_dtype),
        grid=grid,
        in_specs=[
            pl.BlockSpec(memory_space=pltpu.SMEM),
            pl.BlockSpec((1, block_lanes), lambda i: (0, i)),
        ],
        out_specs=pl.BlockSpec((1, block_lanes), lambda i: (0, i)),
        compiler_params=pltpu.CompilerParams(
            dimension_semantics=("parallel",),
            vmem_limit_bytes=_vmem_limit_bytes(),
        ),
    )(k, x2d)


def custom_activation(x, k1, k2, donate=False):
    """Pallas implementation of: k1 * x + k2 (elementwise, scalar params)."""
    orig_shape = x.shape
    dtype = x.dtype
    total = x.size
    compute_dtype = _compute_dtype_for(dtype)

    # Scalars -> a tiny (2,) f32 array held in SMEM.
    k = jnp.stack([jnp.asarray(k1), jnp.asarray(k2)]).astype(jnp.float32)

    # Pick the widest lane width whose (sublane, lane) tile divides total
    # exactly, so the common NCHW-activation case needs no pad/slice copies.
    sublane = max(8, 32 // jnp.dtype(dtype).itemsize)
    lane = None
    for cand in (1024, 512, 256, 128):
        if total % (sublane * cand) == 0:
            lane = cand
            break

    if lane is not None:
        rows = total // lane
        x2d = x.reshape(rows, lane)
        out2d = _run_tiled(k, x2d, dtype, compute_dtype, donate=donate)
        return out2d.reshape(orig_shape)

    # Rare ragged shapes: lane-tile a (1, total) view, masked last block.
    x2d = x.reshape(1, total)
    out2d = _run_ragged(k, x2d, dtype, compute_dtype)
    return out2d.reshape(orig_shape)


if __name__ == "__main__":
    key = jax.random.PRNGKey(0)
    x = jax.random.normal(key, (2, 4, 16, 16), dtype=jnp.float32)

    # Deterministic parameter init matching nn.Parameter(torch.tensor(1.0)) / (0.0)
    k1 = jnp.asarray(1.0, dtype=jnp.float32)
    k2 = jnp.asarray(0.0, dtype=jnp.float32)

    y = custom_activation(x, k1, k2)
    jax.block_until_ready(y)

    # Reference check in plain JAX
    y_ref = k1 * x + k2
    assert y.shape == x.shape and y.dtype == x.dtype
    assert jnp.allclose(y, y_ref, atol=1e-6, rtol=1e-6)

    print("KERNEL_OK")
</pallas_src>

<mosaic_0001>
module attributes {stable_mosaic.version = 11 : i64} {
  func.func @_custom_act_kernel(%arg0: i32, %arg1: memref<2xf32, #tpu.memory_space<smem>>, %arg2: memref<8x256xf32, #tpu.memory_space<vmem>>, %arg3: memref<8x256xf32, #tpu.memory_space<vmem>>) attributes {dimension_semantics = [#tpu.dimension_semantics<parallel>], iteration_bounds = array<i64: 1>, scalar_prefetch = 0 : i64, scratch_operands = 0 : i64, tpu.core_type = #tpu.core_type<tc>, window_params = [{transform_indices = @transform_0, window_bounds = array<i64: 2>}, {transform_indices = @transform_1, window_bounds = array<i64: 8, 256>}, {transform_indices = @transform_2, window_bounds = array<i64: 8, 256>}]} {
    %c0 = arith.constant 0 : index
    %0 = memref.load %arg1[%c0] : memref<2xf32, #tpu.memory_space<smem>>
    %c1 = arith.constant 1 : index
    %1 = memref.load %arg1[%c1] : memref<2xf32, #tpu.memory_space<smem>>
    %c0_0 = arith.constant 0 : index
    %c0_1 = arith.constant 0 : index
    %2 = vector.load %arg2[%c0_0, %c0_1] : memref<8x256xf32, #tpu.memory_space<vmem>>, vector<8x256xf32>
    %3 = vector.broadcast %0 : f32 to vector<8x256xf32>
    %4 = arith.mulf %2, %3 : vector<8x256xf32>
    %5 = vector.broadcast %1 : f32 to vector<8x256xf32>
    %6 = arith.addf %4, %5 : vector<8x256xf32>
    %c0_2 = arith.constant 0 : index
    %c0_3 = arith.constant 0 : index
    %7 = vector.load %arg3[%c0_2, %c0_3] : memref<8x256xf32, #tpu.memory_space<vmem>>, vector<8x256xf32>
    tpu.vector_store %arg3[%c0_2, %c0_3], %6 {strides = array<i32>} : memref<8x256xf32, #tpu.memory_space<vmem>>, vector<8x256xf32>,
    return
  }
  func.func @transform_0(%arg0: i32) -> i32 {
    %c0_i32 = arith.constant 0 : i32
    %c0_i32_0 = arith.constant 0 : i32
    return %c0_i32 : i32
  }
  func.func @transform_1(%arg0: i32) -> (i32, i32) {
    %c0_i32 = arith.constant 0 : i32
    %c0_i32_0 = arith.constant 0 : i32
    return %arg0, %c0_i32 : i32, i32
  }
  func.func @transform_2(%arg0: i32) -> (i32, i32) {
    %c0_i32 = arith.constant 0 : i32
    %c0_i32_0 = arith.constant 0 : i32
    return %arg0, %c0_i32 : i32, i32
  }
}

</mosaic_0001>

<llo_original>
// kernel: tpu_custom_call.1
$region0: #{tpu_custom_call.1}
  #allocation0 [shape = 'u32[]', space=smem, size = 0x4, offset = 0x4, fixed_abs, tag = 'smem constant byte address 0x4 - core index']
  #allocation1 [shape = 'u32[72,128]{1,0:T(1,128)}', space=vmem, size = 0x9000, scoped, tag = 'internal scratch']
  %s0 = inlined_call_operand.hbm [shape: f32[2], index: 0, kind: input, shape index: {}]
  %s1 = inlined_call_operand.hbm [shape: f32[8,256], index: 1, kind: input, shape index: {}]
  %s2 = inlined_call_operand.hbm [shape: f32[8,256], index: 2, kind: output, shape index: {}]
  %s3 = sld [smem:[#allocation0]]
  $region26: #{tpu_custom_call.1} parent=0
    _
  %s5 = ssub.s32 1, %s3
  %s6 = scalar_select 0, %s5, %s3
  $region1: #{tpu_custom_call.1} parent=0
    #allocation2 [shape = 'u8[512]{0}', space=smem, size = 0x200, scoped, tag = 'input window, operand 0, single buffered']
    #allocation3 [shape = 's32[1]{0}', space=sflag, size = 0x4, scoped, tag = 'scoped memory for tpu_custom_call.1']
    #allocation4 [shape = 's32[1]{0}', space=sflag, size = 0x4, scoped, tag = 'scoped memory for tpu_custom_call.1']
    #allocation5 [shape = 's32[1]{0}', space=sflag, size = 0x4, scoped, tag = 'scoped memory for tpu_custom_call.1']
    #allocation6 [shape = 'u8[8192]{0}', space=vmem, size = 0x2000, scoped, tag = 'input window, operand 1, single buffered']
    #allocation7 [shape = 'u8[8192]{0}', space=vmem, size = 0x2000, scoped, tag = 'output window, operand 0, single buffered']
    %7 = vsyncpa [#allocation5], 0
    %8 = vsyncpa [#allocation3], 0
    %9 = vsyncpa [#allocation4], 0
    // Predicated region
    $region2: #{tpu_custom_call.1} parent=1 // pred_check
      _
    $region3: #{tpu_custom_call.1} parent=1 // pred_check_branch
      %11 = sbr.rel (0) target = $region5
    $region4: #{tpu_custom_call.1} parent=1 // pred_region
      %13 = vsyncadd [#allocation5], 0
      %s15 = sshll.u32 %s0, 4
      %s16 = int_to_ptr.hbm [resolvable:$true] %s15
      %18 = dma.hbm_to_smem %s16, 16, [#allocation2], [#allocation5]
    $region5: #{tpu_custom_call.1} parent=1 // pred_fallthru
      _
    // Predicated region
    $region6: #{tpu_custom_call.1} parent=1 // pred_check
      _
    $region7: #{tpu_custom_call.1} parent=1 // pred_check_branch
      %20 = sbr.rel (0) target = $region9
    $region8: #{tpu_custom_call.1} parent=1 // pred_region
      %22 = vsyncadd [#allocation3], 0
      %s24 = sshll.u32 %s1, 4
      %s25 = int_to_ptr.hbm [resolvable:$true] %s24
      %s26 = sshll.u32 [#allocation6], 4
      %s27 = int_to_ptr.vmem [resolvable:$true] %s26
      %29 = dma.hbm_to_vmem [thread:$0]  %s25, 256, %s27, [#allocation3]
    $region9: #{tpu_custom_call.1} parent=1 // pred_fallthru
      _
    // Predicated region
    $region10: #{tpu_custom_call.1} parent=1 // pred_check
      _
    $region11: #{tpu_custom_call.1} parent=1 // pred_check_branch
      %31 = sbr.rel (0) target = $region13
    $region12: #{tpu_custom_call.1} parent=1 // pred_region
      %33 = dma.done [#allocation5], 16
    $region13: #{tpu_custom_call.1} parent=1 // pred_fallthru
      _
    // Predicated region
    $region14: #{tpu_custom_call.1} parent=1 // pred_check
      _
    $region15: #{tpu_custom_call.1} parent=1 // pred_check_branch
      %35 = sbr.rel (0) target = $region17
    $region16: #{tpu_custom_call.1} parent=1 // pred_region
      %37 = dma.done [#allocation3], 256
    $region17: #{tpu_custom_call.1} parent=1 // pred_fallthru
      _
    %38 = sfence
    %s39 = sld [smem:[#allocation2]]
    %s40 = sld [smem:[#allocation2 + $0x1]]
    %v41 = vld [vmem:[#allocation6] sm:$0xff]
    %v42 = vld [vmem:[#allocation6 + $0x8] sm:$0xff]
    %v43 = vstv %s39
    %v44 = vmul.f32 %v41, %v43
    %v45 = vmul.f32 %v42, %v43
    %v46 = vstv %s40
    %v47 = vadd.f32 %v44, %v46
    %v48 = vadd.f32 %v45, %v46
    %49 = vst [vmem:[#allocation7] sm:$0xff] %v47
    %50 = vst [vmem:[#allocation7 + $0x8] sm:$0xff] %v48
    // Predicated region
    $region18: #{tpu_custom_call.1} parent=1 // pred_check
      _
    $region19: #{tpu_custom_call.1} parent=1 // pred_check_branch
      %52 = sbr.rel (0) target = $region21
    $region20: #{tpu_custom_call.1} parent=1 // pred_region
      %54 = vsyncadd [#allocation4], 0
      %s56 = sshll.u32 [#allocation7], 4
      %s57 = int_to_ptr.vmem [resolvable:$true] %s56
      %s58 = sshll.u32 %s2, 4
      %s59 = int_to_ptr.hbm [resolvable:$true] %s58
      %61 = dma.vmem_to_hbm [thread:$0]  %s57, 256, %s59, [#allocation4]
    $region21: #{tpu_custom_call.1} parent=1 // pred_fallthru
      _
    // Predicated region
    $region22: #{tpu_custom_call.1} parent=1 // pred_check
      _
    $region23: #{tpu_custom_call.1} parent=1 // pred_check_branch
      %63 = sbr.rel (0) target = $region25
    $region24: #{tpu_custom_call.1} parent=1 // pred_region
      %65 = dma.done [#allocation4], 256
    $region25: #{tpu_custom_call.1} parent=1 // pred_fallthru
      _
    %66 = vsyncpa [#allocation3], 1
    %67 = vsyncpa [#allocation4], 1
    %68 = vsyncpa [#allocation5], 1

</llo_original>
